<compile_context>
chip_gen: v5e
topology: v5e:2x2
jax: 0.10.0
libtpu: 0.0.40
codegen_flags: <defaults>
</compile_context>

<pallas_src>
import jax
import jax.numpy as jnp
from jax.experimental import pallas as pl
from jax.experimental.pallas import tpu as pltpu


def _hybrid_kernel(x_ref, o_ref):
    # x_ref : (batch, n_params) float32 in SMEM -- only [0, 0] is consumed.
    # o_ref : (1, 1) float32 in VMEM            -- the expectation value.
    theta = x_ref[0, 0]                                     # scalar ld (SMEM)
    theta_vec = jnp.full((1, 1), theta, dtype=jnp.float32)  # one-vreg splat
    # Analytic expectation of the measured bit for H -> RY(theta) -> measure:
    #   E[bit] = (1 + sin(theta)) / 2     (EUP sin, single bundle)
    o_ref[...] = 0.5 * (1.0 + jnp.sin(theta_vec))


def hybrid_forward(x):
    """x: (batch, n_params) array  ->  (1, 1) float32 expectation value.

    Matches HybridFunction.forward: only x[0] (its first/only rotation
    parameter) is consumed; extra batch rows / parameters are ignored.
    """
    assert x.ndim == 2 and x.shape[0] >= 1 and x.shape[1] >= 1, x.shape

    # Python-level dtype guard: no device op is emitted for float32 inputs.
    if x.dtype != jnp.float32:
        x = x.astype(jnp.float32)

    return pl.pallas_call(
        _hybrid_kernel,
        out_shape=jax.ShapeDtypeStruct((1, 1), jnp.float32),
        in_specs=[
            # Whole input lands in SMEM (scalar path); (2,1) f32 pads to
            # one 4 KiB SMEM tile at most -- negligible on v5e/v6e/v7x.
            pl.BlockSpec(memory_space=pltpu.MemorySpace.SMEM),
        ],
        out_specs=pl.BlockSpec(memory_space=pltpu.MemorySpace.VMEM),
        # Truthful tiny cost so XLA does not schedule conservatively around
        # the custom call: 1 sin + mul + add, 4 bytes in / 4 bytes out.
        cost_estimate=pl.CostEstimate(flops=2, transcendentals=1,
                                      bytes_accessed=8),
    )(x)


def hybrid_forward_ref(x):
    """Pure-JAX reference for correctness check."""
    theta = x[0, 0].astype(jnp.float32)
    return (0.5 * (1.0 + jnp.sin(theta))).reshape(1, 1)


if __name__ == "__main__":
    key = jax.random.PRNGKey(0)
    # batch=2 samples, 1 rotation parameter each (single-qubit circuit).
    x = jax.random.normal(key, (2, 1), dtype=jnp.float32)

    out = hybrid_forward(x)
    out = jax.block_until_ready(out)

    ref = hybrid_forward_ref(x)
    assert out.shape == (1, 1), out.shape
    assert jnp.allclose(out, ref, atol=1e-6), (out, ref)

    print("KERNEL_OK")
</pallas_src>

<mosaic_0001>
module attributes {stable_mosaic.version = 11 : i64} {
  func.func @_hybrid_kernel(%arg0: memref<2x1xf32, #tpu.memory_space<smem>>, %arg1: memref<1x1xf32, #tpu.memory_space<vmem>>) attributes {dimension_semantics = [], scalar_prefetch = 0 : i64, scratch_operands = 0 : i64, tpu.core_type = #tpu.core_type<tc>} {
    %c0 = arith.constant 0 : index
    %c0_0 = arith.constant 0 : index
    %0 = memref.load %arg0[%c0, %c0_0] : memref<2x1xf32, #tpu.memory_space<smem>>
    %1 = vector.broadcast %0 : f32 to vector<1x1xf32>
    %2 = math.sin %1 : vector<1x1xf32>
    %cst = arith.constant 1.000000e+00 : f32
    %3 = vector.broadcast %cst : f32 to vector<1x1xf32>
    %4 = arith.addf %3, %2 : vector<1x1xf32>
    %cst_1 = arith.constant 5.000000e-01 : f32
    %5 = vector.broadcast %cst_1 : f32 to vector<1x1xf32>
    %6 = arith.mulf %5, %4 : vector<1x1xf32>
    %c0_2 = arith.constant 0 : index
    %c0_3 = arith.constant 0 : index
    %7 = vector.load %arg1[%c0_2, %c0_3] : memref<1x1xf32, #tpu.memory_space<vmem>>, vector<1x1xf32>
    tpu.vector_store %arg1[%c0_2, %c0_3], %6 {strides = array<i32>} : memref<1x1xf32, #tpu.memory_space<vmem>>, vector<1x1xf32>,
    return
  }
}

</mosaic_0001>

<llo_original>
// kernel: tpu_custom_call.1
$region0: #{tpu_custom_call.1}
  #allocation0 [shape = 'u32[]', space=smem, size = 0x4, offset = 0x4, fixed_abs, tag = 'smem constant byte address 0x4 - core index']
  #allocation1 [shape = 'u32[72,128]{1,0:T(1,128)}', space=vmem, size = 0x9000, scoped, tag = 'internal scratch']
  %s0 = inlined_call_operand.vmem [shape: f32[2,1], index: 0, kind: input, shape index: {}]
  %s1 = inlined_call_operand.hbm [shape: f32[1,1], index: 1, kind: output, shape index: {}]
  %s2 = sld [smem:[#allocation0]]
  $region18: #{tpu_custom_call.1} parent=0
    _
  %s4 = ssub.s32 1, %s2
  %s5 = scalar_select 0, %s4, %s2
  $region1: #{tpu_custom_call.1} parent=0
    #allocation2 [shape = 'u8[1024]{0}', space=smem, size = 0x400, scoped, tag = 'input window, operand 0, single buffered']
    #allocation3 [shape = 's32[1]{0}', space=sflag, size = 0x4, scoped, tag = 'scoped memory for tpu_custom_call.1']
    #allocation4 [shape = 's32[1]{0}', space=sflag, size = 0x4, scoped, tag = 'scoped memory for tpu_custom_call.1']
    #allocation5 [shape = 'u8[512]{0}', space=vmem, size = 0x400, scoped, tag = 'output window, operand 0, single buffered']
    %6 = vsyncpa [#allocation4], 0
    %7 = vsyncpa [#allocation3], 0
    // Predicated region
    $region2: #{tpu_custom_call.1} parent=1 // pred_check
      _
    $region3: #{tpu_custom_call.1} parent=1 // pred_check_branch
      %9 = sbr.rel (0) target = $region5
    $region4: #{tpu_custom_call.1} parent=1 // pred_region
      %11 = vsyncadd [#allocation4], 0
      %s13 = sshll.u32 %s0, 4
      %s14 = int_to_ptr.vmem [resolvable:$true] %s13
      %16 = dma.vmem_to_smem %s14, 32, [#allocation2], [#allocation4]
    $region5: #{tpu_custom_call.1} parent=1 // pred_fallthru
      _
    // Predicated region
    $region6: #{tpu_custom_call.1} parent=1 // pred_check
      _
    $region7: #{tpu_custom_call.1} parent=1 // pred_check_branch
      %18 = sbr.rel (0) target = $region9
    $region8: #{tpu_custom_call.1} parent=1 // pred_region
      %20 = dma.done [#allocation4], 32
    $region9: #{tpu_custom_call.1} parent=1 // pred_fallthru
      _
    %21 = sfence
    %s22 = sld [smem:[#allocation2]]
    %v23 = vstv %s22
    %v24 = vand.u32 2147483647, %v23
    %vm25 = vcmp.le.f32.partialorder %v24, 0.7853982
    %vm26 = vcmp.lt.s32.totalorder %v23, 0
    %v27 = vand.u32 %v23, 2139095040
    %v28 = vshrl.u32 %v27, 23
    %v29 = vsub.s32 %v28, 127
    %v30 = vand.u32 2147483647, %v23
    %v31 = vand.u32 %v30, 8388607
    %v32 = vor.u32 %v31, 8388608
    %v33 = vsub.s32 0, %v32
    %v34 = vadd.s32 %v29, 1
    %vm35 = vcmp.gt.s32.totalorder %v34, 0
    %v36 = vsel %vm35, %v34, 0
    %v37 = vshrl.u32 %v36, 5
    %v38 = vand.u32 %v36, 31
    %v39 = vsub.s32 32, %v38
    %v40 = vshrl.u32 683565275, %v39
    %v41 = vshll.u32 683565275, %v38
    %v42 = vshrl.u32 2475754826, %v39
    %v43 = vor.u32 %v41, %v42
    %v44 = vshll.u32 2475754826, %v38
    %v45 = vshrl.u32 2131351028, %v39
    %v46 = vor.u32 %v44, %v45
    %v47 = vshll.u32 2131351028, %v38
    %v48 = vshrl.u32 2102212464, %v39
    %v49 = vor.u32 %v47, %v48
    %v50 = vshll.u32 2102212464, %v38
    %v51 = vshrl.u32 920167782, %v39
    %v52 = vor.u32 %v50, %v51
    %v53 = vshll.u32 920167782, %v38
    %v54 = vshrl.u32 1326507024, %v39
    %v55 = vor.u32 %v53, %v54
    %vm56 = vcmp.lt.s32.totalorder %v37, 1
    %vm57 = vcmp.lt.s32.totalorder %v37, 2
    %vm58 = vcmp.lt.s32.totalorder %v37, 3
    %vm59 = vcmp.lt.s32.totalorder %v37, 4
    %v60 = vsel %vm56, %v40, %v43
    %v61 = vsel %vm59, %v49, 2102212464
    %v62 = vsel %vm58, %v46, %v61
    %v63 = vsel %vm57, %v60, %v62
    %v64 = vsel %vm56, %v43, %v46
    %v65 = vsel %vm59, %v52, 920167782
    %v66 = vsel %vm58, %v49, %v65
    %v67 = vsel %vm57, %v64, %v66
    %v68 = vsel %vm56, %v46, %v49
    %v69 = vsel %vm59, %v55, 1326507024
    %v70 = vsel %vm58, %v52, %v69
    %v71 = vsel %vm57, %v68, %v70
    %v72 = vshll.u32 %v32, 8
    %v73 = vand.u32 %v72, 65535
    %v74 = vshrl.u32 %v72, 16
    %v75 = vand.u32 %v71, 65535
    %v76 = vshrl.u32 %v71, 16
    %v77 = vmul.u32 %v73, %v75
    %v78 = vmul.u32 %v73, %v76
    %v79 = vmul.u32 %v74, %v75
    %v80 = vmul.u32 %v74, %v76
    %v81 = vshll.u32 %v78, 16
    %v82 = vshrl.u32 %v78, 16
    %v83 = vshll.u32 %v79, 16
    %v84 = vshrl.u32 %v79, 16
    %vm85 = vc.u32 %v77, %v81
    %v86 = vsel %vm85, 1, 0
    %v87 = vadd.s32 %v77, %v81
    %v88 = vadd.s32 %v80, %v86
    %vm89 = vc.u32 %v87, %v83
    %v90 = vsel %vm89, 1, 0
    %v91 = vadd.s32 %v87, %v83
    %v92 = vadd.s32 %v88, %v90
    %v93 = vadd.s32 %v92, %v82
    %v94 = vadd.s32 %v93, %v84
    %v95 = vand.u32 %v72, 65535
    %v96 = vshrl.u32 %v72, 16
    %v97 = vand.u32 %v67, 65535
    %v98 = vshrl.u32 %v67, 16
    %v99 = vmul.u32 %v95, %v97
    %v100 = vmul.u32 %v95, %v98
    %v101 = vmul.u32 %v96, %v97
    %v102 = vmul.u32 %v96, %v98
    %v103 = vshll.u32 %v100, 16
    %v104 = vshrl.u32 %v100, 16
    %v105 = vshll.u32 %v101, 16
    %v106 = vshrl.u32 %v101, 16
    %vm107 = vc.u32 %v99, %v103
    %v108 = vsel %vm107, 1, 0
    %v109 = vadd.s32 %v99, %v103
    %v110 = vadd.s32 %v102, %v108
    %vm111 = vc.u32 %v109, %v105
    %v112 = vsel %vm111, 1, 0
    %v113 = vadd.s32 %v109, %v105
    %v114 = vadd.s32 %v110, %v112
    %v115 = vadd.s32 %v114, %v104
    %v116 = vadd.s32 %v115, %v106
    %v117 = vmul.u32 %v72, %v63
    %v118 = vadd.s32 %v94, %v113
    %vm119 = vc.u32 %v94, %v113
    %v120 = vadd.s32 %v116, 1
    %v121 = vsel %vm119, %v120, %v116
    %v122 = vadd.s32 %v117, %v121
    %v123 = vadd.s32 %v122, 536870912
    %v124 = vshrl.u32 %v123, 30
    %v125 = vshll.u32 %v124, 30
    %v126 = vsub.s32 %v122, %v125
    %vm127 = vcmp.lt.s32.totalorder %v126, 0
    %v128 = vsub.s32 0, %v126
    %v129 = vsel %vm127, %v128, %v126
    %v130 = vclz %v129
    %v131 = vsub.s32 %v130, 2
    %vm132 = vcmp.gt.s32.totalorder 0, %v131
    %v133 = vsel %vm132, 0, %v131
    %v134 = vsub.s32 32, %v133
    %v135 = vshll.u32 %v126, %v133
    %v136 = vshrl.u32 %v118, %v134
    %v137 = vor.u32 %v135, %v136
    %v138 = vsub.s32 4294967266, %v133
    %v139 = vadd.s32 %v138, 127
    %v140 = vshll.u32 %v139, 23
    %v141 = vor.u32 4788187, %v140
    %v142 = vand.u32 2147483647, %v141
    %v144 = vcvt.s32.f32 %v137
    %v145 = vmul.f32 %v144, %v142
    %v146 = vxor.u32 %v145, 2147483648
    %v147 = vsel %vm26, %v146, %v145
    %v148 = vsub.s32 4, %v124
    %v149 = vsel %vm26, %v148, %v124
    %v150 = vsel %vm25, %v23, %v147
    %v151 = vsel %vm25, 0, %v149
    %v152 = vmul.f32 %v150, %v150
    %v153 = vmul.f32 %v152, -0.001358992
    %v154 = vadd.f32 %v153, 0.041655596
    %v155 = vmul.f32 %v152, %v154
    %v156 = vadd.f32 %v155, -0.4999988
    %v157 = vmul.f32 %v152, %v156
    %v158 = vadd.f32 1.0, %v157
    %v159 = vmul.f32 %v150, %v150
    %v160 = vmul.f32 %v159, -0.00019511016
    %v161 = vadd.f32 %v160, 0.008332121
    %v162 = vmul.f32 %v159, %v161
    %v163 = vadd.f32 %v162, -0.16666654
    %v164 = vmul.f32 %v159, %v163
    %v165 = vadd.f32 %v164, 1.0
    %v166 = vmul.f32 %v165, %v150
    %vm167 = vweird.f32 %v23
    %v168 = vadd.s32 %v151, 3
    %v169 = vand.u32 %v168, 3
    %vm170 = vcmp.lt.s32.totalorder %v169, 2
    %vm171 = vcmp.eq.s32.totalorder %v169, 0
    %v172 = vxor.u32 %v166, 2147483648
    %v173 = vsel %vm171, %v158, %v172
    %vm174 = vcmp.eq.s32.totalorder %v169, 2
    %v175 = vxor.u32 %v158, 2147483648
    %v176 = vsel %vm174, %v175, %v166
    %v177 = vsel %vm170, %v173, %v176
    %v178 = vsel %vm167, nan, %v177
    %v179 = vadd.f32 %v178, 1.0
    %v180 = vmul.f32 %v179, 0.5
    %vm181 = vcmask 0
    %182 = vst.msk [vmem:[#allocation5] sm:$0x1] %vm181, %v180
    // Predicated region
    $region10: #{tpu_custom_call.1} parent=1 // pred_check
      _
    $region11: #{tpu_custom_call.1} parent=1 // pred_check_branch
      %184 = sbr.rel (0) target = $region13
    $region12: #{tpu_custom_call.1} parent=1 // pred_region
      %186 = vsyncadd [#allocation3], 0
      %s188 = sshll.u32 [#allocation5], 4
      %s189 = int_to_ptr.vmem [resolvable:$true] %s188
      %s190 = sshll.u32 %s1, 4
      %s191 = int_to_ptr.hbm [resolvable:$true] %s190
      %193 = dma.vmem_to_hbm [thread:$0]  %s189, 16, %s191, [#allocation3]
    $region13: #{tpu_custom_call.1} parent=1 // pred_fallthru
      _
    // Predicated region
    $region14: #{tpu_custom_call.1} parent=1 // pred_check
      _
    $region15: #{tpu_custom_call.1} parent=1 // pred_check_branch
      %195 = sbr.rel (0) target = $region17
    $region16: #{tpu_custom_call.1} parent=1 // pred_region
      %197 = dma.done [#allocation3], 16
    $region17: #{tpu_custom_call.1} parent=1 // pred_fallthru
      _
    %198 = vsyncpa [#allocation3], 1
    %199 = vsyncpa [#allocation4], 1

</llo_original>
